<compile_context>
chip_gen: v5e
topology: v5e:2x2
jax: 0.10.0
libtpu: 0.0.40
codegen_flags: <defaults>
</compile_context>

<pallas_src>
from functools import partial

import jax
import jax.numpy as jnp
from jax.experimental import pallas as pl
from jax.experimental.pallas import tpu as pltpu


_OUT_COLS = 8  # fused output columns: [x_coord, y_coord, score, pad x5]


def _simcc_decode_kernel(x_ref, y_ref, out_ref, *, split_ratio):
    x = x_ref[...]                                   # (TM, Wxp) native dtype
    y = y_ref[...]                                   # (TM, Wyp)
    tm = x.shape[0]
    wx = x.shape[-1]
    wy = y.shape[-1]

    # row-wise max (lane reduce)
    x_max = jnp.max(x, axis=-1, keepdims=True)       # (TM, 1)
    y_max = jnp.max(y, axis=-1, keepdims=True)       # (TM, 1)

    # first-occurrence argmax: min column index among maximal entries
    col_x = jax.lax.broadcasted_iota(jnp.int32, x.shape, 1)
    col_y = jax.lax.broadcasted_iota(jnp.int32, y.shape, 1)
    x_loc = jnp.min(jnp.where(x == x_max, col_x, wx), axis=-1, keepdims=True)
    y_loc = jnp.min(jnp.where(y == y_max, col_y, wy), axis=-1, keepdims=True)

    # vals = x_vals with y_vals substituted where x_vals > y_vals  ==  min
    vals = jnp.minimum(x_max, y_max).astype(jnp.float32)    # (TM, 1)
    invalid = vals <= 0.0

    # locs[vals <= 0] = -1, then divide by split ratio (torch: int/float -> f32)
    kx = jnp.where(invalid, jnp.float32(-1.0), x_loc.astype(jnp.float32)) / split_ratio
    ky = jnp.where(invalid, jnp.float32(-1.0), y_loc.astype(jnp.float32)) / split_ratio

    # Single fused output block; one contiguous writeback DMA per grid step.
    out_ref[...] = jnp.zeros((tm, _OUT_COLS), jnp.float32)
    out_ref[:, 0:1] = kx
    out_ref[:, 1:2] = ky
    out_ref[:, 2:3] = vals


def _pad_lanes(a2):
    """Pad the bin (lane) axis up to a multiple of 128 with -inf."""
    _, w = a2.shape
    wp = ((w + 127) // 128) * 128
    if wp == w:
        return a2
    return jnp.pad(a2, ((0, 0), (0, wp - w)), constant_values=-jnp.inf)


def _choose_row_tile(m, wxp, wyp, itemsize, row_tile=None,
                     vmem_budget_bytes=12 * 1024 * 1024):
    """Pick a row tile: multiple of 8, big enough to hide per-step overhead,
    small enough that two double-buffered input blocks fit the VMEM budget."""
    m_ceil8 = ((m + 7) // 8) * 8
    if row_tile is None:
        rt = vmem_budget_bytes // (2 * (wxp + wyp) * itemsize)
        rt = max(8, min(int(rt), 4096))
        rt = min(rt, m_ceil8)
        if m_ceil8 >= 16:
            # keep >= 2 grid steps: lets the input DMA pipeline and (on v7x)
            # lets the "parallel" grid axis shard across both TensorCores.
            half = ((m_ceil8 // 2 + 7) // 8) * 8
            rt = min(rt, half)
    else:
        rt = min(int(row_tile), m_ceil8)
    rt = max(8, (rt // 8) * 8)
    return rt


def simcc_label_forward(simcc_x, simcc_y, simcc_split_ratio=2.0, row_tile=None):
    """Pallas implementation of SimCCLabel.forward."""
    N, K, Wx = simcc_x.shape
    Ny, Ky, Wy = simcc_y.shape
    assert (N, K) == (Ny, Ky)
    M = N * K

    x2 = _pad_lanes(simcc_x.reshape(M, Wx))
    y2 = _pad_lanes(simcc_y.reshape(M, Wy))
    Wxp = x2.shape[1]
    Wyp = y2.shape[1]

    itemsize = max(jnp.dtype(simcc_x.dtype).itemsize,
                   jnp.dtype(simcc_y.dtype).itemsize)
    rt = _choose_row_tile(M, Wxp, Wyp, itemsize, row_tile)
    grid = pl.cdiv(M, rt)
    m_pad = grid * rt
    if m_pad != M:
        # pad remainder rows with zeros; they are sliced off below
        x2 = jnp.pad(x2, ((0, m_pad - M), (0, 0)))
        y2 = jnp.pad(y2, ((0, m_pad - M), (0, 0)))

    kernel = partial(_simcc_decode_kernel, split_ratio=float(simcc_split_ratio))

    out = pl.pallas_call(
        kernel,
        out_shape=jax.ShapeDtypeStruct((m_pad, _OUT_COLS), jnp.float32),
        grid_spec=pltpu.PrefetchScalarGridSpec(
            num_scalar_prefetch=0,
            grid=(grid,),
            in_specs=[
                pl.BlockSpec((rt, Wxp), lambda i: (i, 0)),
                pl.BlockSpec((rt, Wyp), lambda i: (i, 0)),
            ],
            out_specs=pl.BlockSpec((rt, _OUT_COLS), lambda i: (i, 0)),
        ),
        compiler_params=pltpu.CompilerParams(
            dimension_semantics=("parallel",),
            vmem_limit_bytes=32 * 1024 * 1024,
        ),
    )(x2, y2)

    kx = out[:M, 0]
    ky = out[:M, 1]
    vals = out[:M, 2]
    keypoints = jnp.stack([kx, ky], axis=-1).reshape(N, K, 2)
    scores = vals.reshape(N, K)
    return keypoints, scores


def _reference(simcc_x, simcc_y, split_ratio):
    """Pure-JAX reference matching the PyTorch code."""
    N, K, _ = simcc_x.shape
    x2 = simcc_x.reshape(N * K, -1)
    y2 = simcc_y.reshape(N * K, -1)
    xv = jnp.max(x2, axis=1)
    xl = jnp.argmax(x2, axis=1)
    yv = jnp.max(y2, axis=1)
    yl = jnp.argmax(y2, axis=1)
    vals = jnp.minimum(xv, yv)
    locs = jnp.stack([xl, yl], axis=1).astype(jnp.float32)
    locs = jnp.where((vals <= 0.0)[:, None], jnp.float32(-1.0), locs)
    kp = (locs / split_ratio).reshape(N, K, 2)
    return kp, vals.reshape(N, K)


if __name__ == "__main__":
    # SimCCLabel has no learnable parameters; simcc_split_ratio = 2.0.
    N, K = 2, 17            # batch, keypoints (COCO-style)
    Wx, Wy = 96, 112        # simcc bins; deliberately not multiples of 128
    ratio = 2.0

    key = jax.random.PRNGKey(0)
    kx_key, ky_key = jax.random.split(key)
    simcc_x = jax.random.normal(kx_key, (N, K, Wx), dtype=jnp.float32)
    simcc_y = jax.random.normal(ky_key, (N, K, Wy), dtype=jnp.float32)

    keypoints, scores = simcc_label_forward(simcc_x, simcc_y, simcc_split_ratio=ratio)
    keypoints = jax.block_until_ready(keypoints)
    scores = jax.block_until_ready(scores)

    kp_ref, sc_ref = _reference(simcc_x, simcc_y, ratio)
    assert keypoints.shape == (N, K, 2) and scores.shape == (N, K)
    assert jnp.allclose(keypoints, kp_ref), "keypoints mismatch"
    assert jnp.allclose(scores, sc_ref), "scores mismatch"

    print("KERNEL_OK")
</pallas_src>

<mosaic_0001>
module attributes {stable_mosaic.version = 11 : i64} {
  func.func @_simcc_decode_kernel(%arg0: i32, %arg1: memref<24x128xf32, #tpu.memory_space<vmem>>, %arg2: memref<24x128xf32, #tpu.memory_space<vmem>>, %arg3: memref<24x8xf32, #tpu.memory_space<vmem>>) attributes {dimension_semantics = [#tpu.dimension_semantics<parallel>], iteration_bounds = array<i64: 2>, scalar_prefetch = 0 : i64, scratch_operands = 0 : i64, tpu.core_type = #tpu.core_type<tc>, window_params = [{transform_indices = @transform_0, window_bounds = array<i64: 24, 128>}, {transform_indices = @transform_1, window_bounds = array<i64: 24, 128>}, {transform_indices = @transform_2, window_bounds = array<i64: 24, 8>}]} {
    %c0 = arith.constant 0 : index
    %c0_0 = arith.constant 0 : index
    %0 = vector.load %arg1[%c0, %c0_0] : memref<24x128xf32, #tpu.memory_space<vmem>>, vector<24x128xf32>
    %c0_1 = arith.constant 0 : index
    %c0_2 = arith.constant 0 : index
    %1 = vector.load %arg2[%c0_1, %c0_2] : memref<24x128xf32, #tpu.memory_space<vmem>>, vector<24x128xf32>
    %cst = arith.constant dense<0xFF800000> : vector<24xf32>
    %2 = vector.multi_reduction <maximumf>, %0, %cst [1] : vector<24x128xf32> to vector<24xf32>
    %3 = vector.shape_cast %2 : vector<24xf32> to vector<24x1xf32>
    %cst_3 = arith.constant dense<0xFF800000> : vector<24xf32>
    %4 = vector.multi_reduction <maximumf>, %1, %cst_3 [1] : vector<24x128xf32> to vector<24xf32>
    %5 = vector.shape_cast %4 : vector<24xf32> to vector<24x1xf32>
    %6 = tpu.iota {dimensions = array<i32: 1>} : vector<24x128xi32>
    %7 = tpu.iota {dimensions = array<i32: 1>} : vector<24x128xi32>
    %8 = vector.broadcast %3 : vector<24x1xf32> to vector<24x128xf32>
    %9 = arith.cmpf oeq, %0, %8 : vector<24x128xf32>
    %c128_i32 = arith.constant 128 : i32
    %10 = vector.broadcast %c128_i32 : i32 to vector<24x128xi32>
    %11 = arith.select %9, %6, %10 : vector<24x128xi1>, vector<24x128xi32>
    %cst_4 = arith.constant dense<2147483647> : vector<24xi32>
    %12 = vector.multi_reduction <minsi>, %11, %cst_4 [1] : vector<24x128xi32> to vector<24xi32>
    %13 = vector.shape_cast %12 : vector<24xi32> to vector<24x1xi32>
    %14 = vector.broadcast %5 : vector<24x1xf32> to vector<24x128xf32>
    %15 = arith.cmpf oeq, %1, %14 : vector<24x128xf32>
    %c128_i32_5 = arith.constant 128 : i32
    %16 = vector.broadcast %c128_i32_5 : i32 to vector<24x128xi32>
    %17 = arith.select %15, %7, %16 : vector<24x128xi1>, vector<24x128xi32>
    %cst_6 = arith.constant dense<2147483647> : vector<24xi32>
    %18 = vector.multi_reduction <minsi>, %17, %cst_6 [1] : vector<24x128xi32> to vector<24xi32>
    %19 = vector.shape_cast %18 : vector<24xi32> to vector<24x1xi32>
    %20 = arith.minimumf %3, %5 : vector<24x1xf32>
    %cst_7 = arith.constant 0.000000e+00 : f32
    %21 = vector.broadcast %cst_7 : f32 to vector<24x1xf32>
    %22 = arith.cmpf ole, %20, %21 : vector<24x1xf32>
    %23 = arith.sitofp %13 : vector<24x1xi32> to vector<24x1xf32>
    %cst_8 = arith.constant -1.000000e+00 : f32
    %24 = vector.broadcast %cst_8 : f32 to vector<24x1xf32>
    %25 = arith.select %22, %24, %23 : vector<24x1xi1>, vector<24x1xf32>
    %cst_9 = arith.constant 2.000000e+00 : f32
    %26 = vector.broadcast %cst_9 : f32 to vector<24x1xf32>
    %27 = arith.divf %25, %26 : vector<24x1xf32>
    %28 = arith.sitofp %19 : vector<24x1xi32> to vector<24x1xf32>
    %cst_10 = arith.constant -1.000000e+00 : f32
    %29 = vector.broadcast %cst_10 : f32 to vector<24x1xf32>
    %30 = arith.select %22, %29, %28 : vector<24x1xi1>, vector<24x1xf32>
    %cst_11 = arith.constant 2.000000e+00 : f32
    %31 = vector.broadcast %cst_11 : f32 to vector<24x1xf32>
    %32 = arith.divf %30, %31 : vector<24x1xf32>
    %cst_12 = arith.constant 0.000000e+00 : f32
    %33 = vector.broadcast %cst_12 : f32 to vector<24x8xf32>
    %c0_13 = arith.constant 0 : index
    %c0_14 = arith.constant 0 : index
    %34 = vector.load %arg3[%c0_13, %c0_14] : memref<24x8xf32, #tpu.memory_space<vmem>>, vector<24x8xf32>
    tpu.vector_store %arg3[%c0_13, %c0_14], %33 {strides = array<i32>} : memref<24x8xf32, #tpu.memory_space<vmem>>, vector<24x8xf32>,
    %c0_15 = arith.constant 0 : index
    %c0_16 = arith.constant 0 : index
    %35 = vector.load %arg3[%c0_15, %c0_16] : memref<24x8xf32, #tpu.memory_space<vmem>>, vector<24x1xf32>
    tpu.vector_store %arg3[%c0_15, %c0_16], %27 {strides = array<i32>} : memref<24x8xf32, #tpu.memory_space<vmem>>, vector<24x1xf32>,
    %c0_17 = arith.constant 0 : index
    %c1 = arith.constant 1 : index
    %36 = vector.load %arg3[%c0_17, %c1] : memref<24x8xf32, #tpu.memory_space<vmem>>, vector<24x1xf32>
    tpu.vector_store %arg3[%c0_17, %c1], %32 {strides = array<i32>} : memref<24x8xf32, #tpu.memory_space<vmem>>, vector<24x1xf32>,
    %c0_18 = arith.constant 0 : index
    %c2 = arith.constant 2 : index
    %37 = vector.load %arg3[%c0_18, %c2] : memref<24x8xf32, #tpu.memory_space<vmem>>, vector<24x1xf32>
    tpu.vector_store %arg3[%c0_18, %c2], %20 {strides = array<i32>} : memref<24x8xf32, #tpu.memory_space<vmem>>, vector<24x1xf32>,
    return
  }
  func.func @transform_0(%arg0: i32) -> (i32, i32) {
    %c0_i32 = arith.constant 0 : i32
    %c0_i32_0 = arith.constant 0 : i32
    return %arg0, %c0_i32 : i32, i32
  }
  func.func @transform_1(%arg0: i32) -> (i32, i32) {
    %c0_i32 = arith.constant 0 : i32
    %c0_i32_0 = arith.constant 0 : i32
    return %arg0, %c0_i32 : i32, i32
  }
  func.func @transform_2(%arg0: i32) -> (i32, i32) {
    %c0_i32 = arith.constant 0 : i32
    %c0_i32_0 = arith.constant 0 : i32
    return %arg0, %c0_i32 : i32, i32
  }
}

</mosaic_0001>

<llo_original>
// kernel: tpu_custom_call.1
$region0: #{tpu_custom_call.1}
  #allocation0 [shape = 'u32[]', space=smem, size = 0x4, offset = 0x4, fixed_abs, tag = 'smem constant byte address 0x4 - core index']
  #allocation1 [shape = 'u32[72,128]{1,0:T(1,128)}', space=vmem, size = 0x9000, scoped, tag = 'internal scratch']
  %s0 = inlined_call_operand.hbm [shape: f32[48,128], index: 0, kind: input, shape index: {}]
  %s1 = inlined_call_operand.hbm [shape: f32[48,128], index: 1, kind: input, shape index: {}]
  %s2 = inlined_call_operand.vmem [shape: f32[48,8], index: 2, kind: output, shape index: {}]
  %s3 = sld [smem:[#allocation0]]
  $region49: #{tpu_custom_call.1} parent=0
    _
  %s5 = ssub.s32 1, %s3
  %s6 = scalar_select 0, %s5, %s3
  $region1: #{tpu_custom_call.1} parent=0
    #allocation2 [shape = 'u8[24576]{0}', space=vmem, size = 0x6000, scoped, tag = 'input window, operand 0']
    #allocation3 [shape = 's32[2]{0}', space=sflag, size = 0x8, scoped, tag = 'scoped memory for tpu_custom_call.1']
    #allocation4 [shape = 'u8[24576]{0}', space=vmem, size = 0x6000, scoped, tag = 'input window, operand 1']
    #allocation5 [shape = 's32[2]{0}', space=sflag, size = 0x8, scoped, tag = 'scoped memory for tpu_custom_call.1']
    %7 = vsyncpa [#allocation3], 0
    %s8 = scalar_lea.sflag [#allocation3], 1
    %9 = vsyncpa %s8, 0
    %10 = vsyncpa [#allocation5], 0
    %s11 = scalar_lea.sflag [#allocation5], 1
    %12 = vsyncpa %s11, 0
    loop: start=0, step=1, limit=4
    $region2: #{tpu_custom_call.1} parent=1 // loop_pre_header
      _
    $region3: #{tpu_custom_call.1} parent=1 // loop_header
      %s14 = sphi 0, %s18
      %p15 = scmp.ge.s32.totalorder %s14, 4
      %s24 = sphi 0, %s26
      %s27 = sphi 0, %s24
      %s28 = sphi 0, %s27
      %s44 = sphi 0, %s28
      %s50 = sphi 0, %s52
      %s53 = sphi 0, %s50
      %s54 = sphi 0, %s53
      %s70 = sphi 0, %s54
      %s76 = sphi 0, %s78
      %s79 = sphi 0, %s76
      %s80 = sphi 0, %s79
      %s96 = sphi 0, %s80
    $region4: #{tpu_custom_call.1} parent=1 // loop_header_branch
      %17 = sbr.rel (%p15) target = $region8
    $region5: #{tpu_custom_call.1} parent=1 // loop_body
      %s19 = ssub.s32 %s14, 1
      %s20 = ssub.s32 %s14, 2
      %s21 = sadd.s32 %s14, 1
      %s22 = ssub.s32 %s14, %s21
      %p23 = scmp.eq.s32.totalorder %s22, 0
      %s25 = sadd.s32 %s24, 1
      %s26 = scalar_select %p23, %s24, %s25
      %p29 = pneg %p23
      %p30 = scmp.eq.s32.totalorder %s14, 1
      %p31 = por %p29, %p30
      %p32 = scmp.ne.s32.totalorder %s24, %s27
      %p33 = scmp.eq.s32.totalorder %s14, 0
      %p34 = por %p32, %p33
      %p35 = scmp.ne.s32.totalorder %s24, %s27
      %p36 = scmp.eq.s32.totalorder %s19, 1
      %p37 = por %p35, %p36
      %p38 = scmp.ne.s32.totalorder %s27, %s28
      %p39 = scmp.eq.s32.totalorder %s19, 0
      %p40 = por %p38, %p39
      %p41 = scmp.ne.s32.totalorder %s27, %s28
      %p42 = scmp.eq.s32.totalorder %s20, 1
      %p43 = por %p41, %p42
      %p45 = scmp.ne.s32.totalorder %s28, %s44
      %p46 = scmp.eq.s32.totalorder %s20, 0
      %p47 = por %p45, %p46
      %s48 = ssub.s32 %s14, %s21
      %p49 = scmp.eq.s32.totalorder %s48, 0
      %s51 = sadd.s32 %s50, 1
      %s52 = scalar_select %p49, %s50, %s51
      %p55 = pneg %p49
      %p56 = scmp.eq.s32.totalorder %s14, 1
      %p57 = por %p55, %p56
      %p58 = scmp.ne.s32.totalorder %s50, %s53
      %p59 = scmp.eq.s32.totalorder %s14, 0
      %p60 = por %p58, %p59
      %p61 = scmp.ne.s32.totalorder %s50, %s53
      %p62 = scmp.eq.s32.totalorder %s19, 1
      %p63 = por %p61, %p62
      %p64 = scmp.ne.s32.totalorder %s53, %s54
      %p65 = scmp.eq.s32.totalorder %s19, 0
      %p66 = por %p64, %p65
      %p67 = scmp.ne.s32.totalorder %s53, %s54
      %p68 = scmp.eq.s32.totalorder %s20, 1
      %p69 = por %p67, %p68
      %p71 = scmp.ne.s32.totalorder %s54, %s70
      %p72 = scmp.eq.s32.totalorder %s20, 0
      %p73 = por %p71, %p72
      %s74 = ssub.s32 %s14, %s21
      %p75 = scmp.eq.s32.totalorder %s74, 0
      %s77 = sadd.s32 %s76, 1
      %s78 = scalar_select %p75, %s76, %s77
      %p81 = pneg %p75
      %p82 = scmp.eq.s32.totalorder %s14, 1
      %p83 = por %p81, %p82
      %p84 = scmp.ne.s32.totalorder %s76, %s79
      %p85 = scmp.eq.s32.totalorder %s14, 0
      %p86 = por %p84, %p85
      %p87 = scmp.ne.s32.totalorder %s76, %s79
      %p88 = scmp.eq.s32.totalorder %s19, 1
      %p89 = por %p87, %p88
      %p90 = scmp.ne.s32.totalorder %s79, %s80
      %p91 = scmp.eq.s32.totalorder %s19, 0
      %p92 = por %p90, %p91
      %p93 = scmp.ne.s32.totalorder %s79, %s80
      %p94 = scmp.eq.s32.totalorder %s20, 1
      %p95 = por %p93, %p94
      %p97 = scmp.ne.s32.totalorder %s80, %s96
      %p98 = scmp.eq.s32.totalorder %s20, 0
      %p99 = por %p97, %p98
      %p100 = scmp.le.s32.totalorder 1, %s14
      %p101 = scmp.lt.s32.totalorder %s14, 3
      %p102 = pnand %p100, %p101
      %p103 = pneg %p102
      // Predicated region
      $region9: #{tpu_custom_call.1} parent=5 // pred_check
        _
      $region10: #{tpu_custom_call.1} parent=5 // pred_check_branch
        %105 = sbr.rel (%p102) target = $region12
      $region11: #{tpu_custom_call.1} parent=5 // pred_region
        %s106 = ssub.s32 %s14, 1
      $region12: #{tpu_custom_call.1} parent=5 // pred_fallthru
        _
      %p107 = scmp.lt.s32.totalorder %s14, 2
      // Predicated region
      $region13: #{tpu_custom_call.1} parent=5 // pred_check
        %p108 = pneg %p107
      $region14: #{tpu_custom_call.1} parent=5 // pred_check_branch
        %110 = sbr.rel (%p108) target = $region16
      $region15: #{tpu_custom_call.1} parent=5 // pred_region
        // Predicated region
        $region17: #{tpu_custom_call.1} parent=15 // pred_check
          %p111 = pneg %p34
        $region18: #{tpu_custom_call.1} parent=15 // pred_check_branch
          %113 = sbr.rel (%p111) target = $region20
        $region19: #{tpu_custom_call.1} parent=15 // pred_region
          %s114 = sand.u32 %s24, 1
          %s115 = scalar_lea.sflag [#allocation3], %s114
          %s116 = sand.u32 %s24, 1
          %s117 = smul.addr %s116, 24
          %s118 = scalar_lea.vmem [#allocation2], %s117
          %s119 = smul.u32 3, %s14
          %121 = vsyncadd %s115, 0
          %s122 = smul.addr %s119, 8
          %s123 = scalar_lea.hbm %s0, %s122
          %s124 = sshll.u32 %s123, 4
          %s125 = int_to_ptr.hbm [resolvable:$true] %s124
          %s126 = sshll.u32 %s118, 4
          %s127 = int_to_ptr.vmem [resolvable:$true] %s126
          %132 = dma.hbm_to_vmem [thread:$0]  %s125, 384, %s127, %s115, 128, 128, 8
        $region20: #{tpu_custom_call.1} parent=15 // pred_fallthru
          _
        // Predicated region
        $region21: #{tpu_custom_call.1} parent=15 // pred_check
          %p133 = pneg %p60
        $region22: #{tpu_custom_call.1} parent=15 // pred_check_branch
          %135 = sbr.rel (%p133) target = $region24
        $region23: #{tpu_custom_call.1} parent=15 // pred_region
          %s136 = sand.u32 %s50, 1
          %s137 = scalar_lea.sflag [#allocation5], %s136
          %s138 = sand.u32 %s50, 1
          %s139 = smul.addr %s138, 24
          %s140 = scalar_lea.vmem [#allocation4], %s139
          %s141 = smul.u32 3, %s14
          %143 = vsyncadd %s137, 0
          %s144 = smul.addr %s141, 8
          %s145 = scalar_lea.hbm %s1, %s144
          %s146 = sshll.u32 %s145, 4
          %s147 = int_to_ptr.hbm [resolvable:$true] %s146
          %s148 = sshll.u32 %s140, 4
          %s149 = int_to_ptr.vmem [resolvable:$true] %s148
          %154 = dma.hbm_to_vmem [thread:$0]  %s147, 384, %s149, %s137, 128, 128, 8
        $region24: #{tpu_custom_call.1} parent=15 // pred_fallthru
          _
      $region16: #{tpu_custom_call.1} parent=5 // pred_fallthru
        _
      %p155 = scmp.le.s32.totalorder 1, %s14
      %p156 = scmp.lt.s32.totalorder %s14, 3
      %p157 = pnand %p155, %p156
      %p158 = pneg %p157
      // Predicated region
      $region25: #{tpu_custom_call.1} parent=5 // pred_check
        _
      $region26: #{tpu_custom_call.1} parent=5 // pred_check_branch
        %160 = sbr.rel (%p157) target = $region28
      $region27: #{tpu_custom_call.1} parent=5 // pred_region
        %s161 = ssub.s32 %s14, 1
        %s162 = sand.u32 %s27, 1
        %s163 = scalar_lea.sflag [#allocation3], %s162
        %s164 = sand.u32 %s27, 1
        %s165 = smul.addr %s164, 24
        %s166 = scalar_lea.vmem [#allocation2], %s165
        // Predicated region
        $region29: #{tpu_custom_call.1} parent=27 // pred_check
          %p167 = pneg %p40
        $region30: #{tpu_custom_call.1} parent=27 // pred_check_branch
          %169 = sbr.rel (%p167) target = $region32
        $region31: #{tpu_custom_call.1} parent=27 // pred_region
          %171 = dma.done %s163, 384
        $region32: #{tpu_custom_call.1} parent=27 // pred_fallthru
          _
        %s172 = sand.u32 %s53, 1
        %s173 = scalar_lea.sflag [#allocation5], %s172
        %s174 = sand.u32 %s53, 1
        %s175 = smul.addr %s174, 24
        %s176 = scalar_lea.vmem [#allocation4], %s175
        // Predicated region
        $region33: #{tpu_custom_call.1} parent=27 // pred_check
          %p177 = pneg %p66
        $region34: #{tpu_custom_call.1} parent=27 // pred_check_branch
          %179 = sbr.rel (%p177) target = $region36
        $region35: #{tpu_custom_call.1} parent=27 // pred_region
          %181 = dma.done %s173, 384
        $region36: #{tpu_custom_call.1} parent=27 // pred_fallthru
          _
        %s182 = sand.u32 %s27, 1
        %s183 = scalar_lea.sflag [#allocation3], %s182
        %s184 = sand.u32 %s27, 1
        %s185 = smul.addr %s184, 24
        %s186 = scalar_lea.vmem [#allocation2], %s185
        %p187 = pneg %p40
        %p188 = pneg %p37
        %s189 = sand.u32 %s53, 1
        %s190 = scalar_lea.sflag [#allocation5], %s189
        %s191 = sand.u32 %s53, 1
        %s192 = smul.addr %s191, 24
        %s193 = scalar_lea.vmem [#allocation4], %s192
        %p194 = pneg %p66
        %p195 = pneg %p63
        %p196 = pneg %p92
        %p197 = pneg %p89
        %s198 = smul.u32 3, %s19
        %p199 = scmp.lt.s32.totalorder %s198, 5
        %s200 = scalar_select %p199, %s198, 5
        %s201 = smul.addr %s200, 8
        %s202 = scalar_lea.vmem %s2, %s201
        %s203 = smul.u32 3, %s19
        %s204 = smul.u32 3, %s19
        %s205 = smul.u32 3, %s19
        %p206 = scmp.lt.s32.totalorder %s205, 5
        %s207 = scalar_select %p206, %s205, 5
        %s208 = smul.addr %s207, 8
        %s209 = scalar_lea.vmem %s2, %s208
        %s210 = smul.u32 3, %s19
        %v211 = vld [vmem:[%s166] sm:$0xff]
        %v212 = vld [vmem:[%s166 + $0x8] sm:$0xff]
        %v213 = vld [vmem:[%s166 + $0x10] sm:$0xff]
        %v214 = vld [vmem:[%s176] sm:$0xff]
        %v215 = vld [vmem:[%s176 + $0x8] sm:$0xff]
        %v216 = vld [vmem:[%s176 + $0x10] sm:$0xff]
        %217 = vmax.xlane.f32.xlu0 %v211
        %v218 = vpop.xlane.xlu0 %217
        %219 = vmax.xlane.f32.xlu0 %v212
        %v220 = vpop.xlane.xlu0 %219
        %221 = vmax.xlane.f32.xlu0 %v213
        %v222 = vpop.xlane.xlu0 %221
        %223 = vmax.xlane.f32.xlu0 %v214
        %v224 = vpop.xlane.xlu0 %223
        %225 = vmax.xlane.f32.xlu0 %v215
        %v226 = vpop.xlane.xlu0 %225
        %227 = vmax.xlane.f32.xlu0 %v216
        %v228 = vpop.xlane.xlu0 %227
        %v229 = vlaneseq
        %v230 = vand.u32 %v229, 127
        %vm231 = vcmp.eq.f32.partialorder %v211, %v218
        %vm232 = vcmp.eq.f32.partialorder %v212, %v220
        %vm233 = vcmp.eq.f32.partialorder %v213, %v222
        %v234 = vsel %vm231, %v230, 128
        %v235 = vsel %vm232, %v230, 128
        %v236 = vsel %vm233, %v230, 128
        %v237 = vand.u32 %v234, 65535
        %v238 = vshra.s32 %v234, 16
        %v239 = vcvt.s32.f32 %v237
        %v240 = vcvt.s32.f32 %v238
        %241 = vmin.xlane.f32.xlu0 %v240
        %v242 = vpop.xlane.xlu0 %241
        %vm243 = vcmp.eq.f32.partialorder %v240, %v242
        %v244 = vsel %vm243, %v239, inf
        %245 = vmin.xlane.f32.xlu0 %v244
        %v246 = vpop.xlane.xlu0 %245
        %v247 = vcvt.f32.s32 %v246
        %v248 = vcvt.f32.s32 %v242
        %v249 = vshll.u32 %v248, 16
        %v250 = vadd.s32 %v249, %v247
        %v251 = vand.u32 %v235, 65535
        %v252 = vshra.s32 %v235, 16
        %v253 = vcvt.s32.f32 %v251
        %v254 = vcvt.s32.f32 %v252
        %255 = vmin.xlane.f32.xlu0 %v254
        %v256 = vpop.xlane.xlu0 %255
        %vm257 = vcmp.eq.f32.partialorder %v254, %v256
        %v258 = vsel %vm257, %v253, inf
        %259 = vmin.xlane.f32.xlu0 %v258
        %v260 = vpop.xlane.xlu0 %259
        %v261 = vcvt.f32.s32 %v260
        %v262 = vcvt.f32.s32 %v256
        %v263 = vshll.u32 %v262, 16
        %v264 = vadd.s32 %v263, %v261
        %v265 = vand.u32 %v236, 65535
        %v266 = vshra.s32 %v236, 16
        %v267 = vcvt.s32.f32 %v265
        %v268 = vcvt.s32.f32 %v266
        %269 = vmin.xlane.f32.xlu0 %v268
        %v270 = vpop.xlane.xlu0 %269
        %vm271 = vcmp.eq.f32.partialorder %v268, %v270
        %v272 = vsel %vm271, %v267, inf
        %273 = vmin.xlane.f32.xlu0 %v272
        %v274 = vpop.xlane.xlu0 %273
        %v275 = vcvt.f32.s32 %v274
        %v276 = vcvt.f32.s32 %v270
        %v277 = vshll.u32 %v276, 16
        %v278 = vadd.s32 %v277, %v275
        %vm279 = vcmp.eq.f32.partialorder %v214, %v224
        %vm280 = vcmp.eq.f32.partialorder %v215, %v226
        %vm281 = vcmp.eq.f32.partialorder %v216, %v228
        %v282 = vsel %vm279, %v230, 128
        %v283 = vsel %vm280, %v230, 128
        %v284 = vsel %vm281, %v230, 128
        %v285 = vand.u32 %v282, 65535
        %v286 = vshra.s32 %v282, 16
        %v287 = vcvt.s32.f32 %v285
        %v288 = vcvt.s32.f32 %v286
        %289 = vmin.xlane.f32.xlu0 %v288
        %v290 = vpop.xlane.xlu0 %289
        %vm291 = vcmp.eq.f32.partialorder %v288, %v290
        %v292 = vsel %vm291, %v287, inf
        %293 = vmin.xlane.f32.xlu0 %v292
        %v294 = vpop.xlane.xlu0 %293
        %v295 = vcvt.f32.s32 %v294
        %v296 = vcvt.f32.s32 %v290
        %v297 = vshll.u32 %v296, 16
        %v298 = vadd.s32 %v297, %v295
        %v299 = vand.u32 %v283, 65535
        %v300 = vshra.s32 %v283, 16
        %v301 = vcvt.s32.f32 %v299
        %v302 = vcvt.s32.f32 %v300
        %303 = vmin.xlane.f32.xlu0 %v302
        %v304 = vpop.xlane.xlu0 %303
        %vm305 = vcmp.eq.f32.partialorder %v302, %v304
        %v306 = vsel %vm305, %v301, inf
        %307 = vmin.xlane.f32.xlu0 %v306
        %v308 = vpop.xlane.xlu0 %307
        %v309 = vcvt.f32.s32 %v308
        %v310 = vcvt.f32.s32 %v304
        %v311 = vshll.u32 %v310, 16
        %v312 = vadd.s32 %v311, %v309
        %v313 = vand.u32 %v284, 65535
        %v314 = vshra.s32 %v284, 16
        %v315 = vcvt.s32.f32 %v313
        %v316 = vcvt.s32.f32 %v314
        %317 = vmin.xlane.f32.xlu0 %v316
        %v318 = vpop.xlane.xlu0 %317
        %vm319 = vcmp.eq.f32.partialorder %v316, %v318
        %v320 = vsel %vm319, %v315, inf
        %321 = vmin.xlane.f32.xlu0 %v320
        %v322 = vpop.xlane.xlu0 %321
        %v323 = vcvt.f32.s32 %v322
        %v324 = vcvt.f32.s32 %v318
        %v325 = vshll.u32 %v324, 16
        %v326 = vadd.s32 %v325, %v323
        %v327 = vmin.f32 %v218, %v224
        %v328 = vmin.f32 %v220, %v226
        %v329 = vmin.f32 %v222, %v228
        %vm330 = vcmp.le.f32.partialorder %v327, 0.0
        %vm331 = vcmp.le.f32.partialorder %v328, 0.0
        %vm332 = vcmp.le.f32.partialorder %v329, 0.0
        %v333 = vcvt.s32.f32 %v250
        %v334 = vcvt.s32.f32 %v264
        %v335 = vcvt.s32.f32 %v278
        %v336 = vsel %vm330, -1.0, %v333
        %v337 = vsel %vm331, -1.0, %v334
        %v338 = vsel %vm332, -1.0, %v335
        %v339 = vrcp.pop 2.0
        %v340 = vmul.f32 2.0, %v339
        %v341 = vsub.f32 1.0, %v340
        %v342 = vmul.f32 %v339, %v341
        %v343 = vadd.f32 %v339, %v342
        %vm344 = vweird.f32 %v339
        %v345 = vsel %vm344, %v339, %v343
        %v346 = vmul.f32 %v336, %v345
        %v347 = vmul.f32 %v337, %v345
        %v348 = vmul.f32 %v338, %v345
        %v349 = vcvt.s32.f32 %v298
        %v350 = vcvt.s32.f32 %v312
        %v351 = vcvt.s32.f32 %v326
        %v352 = vsel %vm330, -1.0, %v349
        %v353 = vsel %vm331, -1.0, %v350
        %v354 = vsel %vm332, -1.0, %v351
        %v355 = vmul.f32 %v352, %v345
        %v356 = vmul.f32 %v353, %v345
        %v357 = vmul.f32 %v354, %v345
        %vm358 = vcmask 64512
        %359 = vst.msk [vmem:[%s209] sm:$0xff] %vm358, 0.0
        %360 = vst.msk [vmem:[%s209 + $0x8] sm:$0xff] %vm358, 0.0
        %361 = vst.msk [vmem:[%s209 + $0x10] sm:$0xff] %vm358, 0.0
        %vm362 = vcmask 7168
        %363 = vst.msk [vmem:[%s209] sm:$0xff] %vm362, %v346
        %364 = vst.msk [vmem:[%s209 + $0x8] sm:$0xff] %vm362, %v347
        %365 = vst.msk [vmem:[%s209 + $0x10] sm:$0xff] %vm362, %v348
        %vm366 = vcmask 15368
        %367 = vst.msk [vmem:[%s209] sm:$0xff] %vm366, %v355
        %368 = vst.msk [vmem:[%s209 + $0x8] sm:$0xff] %vm366, %v356
        %369 = vst.msk [vmem:[%s209 + $0x10] sm:$0xff] %vm366, %v357
        %vm370 = vcmask 23568
        %371 = vst.msk [vmem:[%s209] sm:$0xff] %vm370, %v327
        %372 = vst.msk [vmem:[%s209 + $0x8] sm:$0xff] %vm370, %v328
        %373 = vst.msk [vmem:[%s209 + $0x10] sm:$0xff] %vm370, %v329
        %s374 = smul.u32 3, %s19
        %p375 = scmp.lt.s32.totalorder %s374, 5
        %s376 = scalar_select %p375, %s374, 5
        %s377 = smul.addr %s376, 8
        %s378 = scalar_lea.vmem %s2, %s377
        // Predicated region
        $region37: #{tpu_custom_call.1} parent=27 // pred_check
          %p379 = pneg %p89
        $region38: #{tpu_custom_call.1} parent=27 // pred_check_branch
          %381 = sbr.rel (%p379) target = $region40
        $region39: #{tpu_custom_call.1} parent=27 // pred_region
          %s382 = smul.u32 3, %s19
        $region40: #{tpu_custom_call.1} parent=27 // pred_fallthru
          _
      $region28: #{tpu_custom_call.1} parent=5 // pred_fallthru
        _
      %p383 = scmp.le.s32.totalorder 2, %s14
      // Predicated region
      $region41: #{tpu_custom_call.1} parent=5 // pred_check
        %p384 = pneg %p383
      $region42: #{tpu_custom_call.1} parent=5 // pred_check_branch
        %386 = sbr.rel (%p384) target = $region44
      $region43: #{tpu_custom_call.1} parent=5 // pred_region
        %s387 = ssub.s32 %s14, 2
        // Predicated region
        $region45: #{tpu_custom_call.1} parent=43 // pred_check
          %p388 = pneg %p95
        $region46: #{tpu_custom_call.1} parent=43 // pred_check_branch
          %390 = sbr.rel (%p388) target = $region48
        $region47: #{tpu_custom_call.1} parent=43 // pred_region
          %s391 = smul.u32 3, %s20
          %p392 = scmp.lt.s32.totalorder %s391, 5
          %s393 = scalar_select %p392, %s391, 5
          %s394 = smul.addr %s393, 8
          %s395 = scalar_lea.vmem %s2, %s394
        $region48: #{tpu_custom_call.1} parent=43 // pred_fallthru
          _
      $region44: #{tpu_custom_call.1} parent=5 // pred_fallthru
        _
    $region6: #{tpu_custom_call.1} parent=1 // loop_footer
      %s18 = sadd.s32 1, %s14
    $region7: #{tpu_custom_call.1} parent=1 // loop_footer_branch
      %13 = sbr.rel target = $region3
    $region8: #{tpu_custom_call.1} parent=1 // loop_exit
      _
    %396 = vsyncpa [#allocation3], 1
    %s397 = scalar_lea.sflag [#allocation3], 1
    %398 = vsyncpa %s397, 1
    %399 = vsyncpa [#allocation5], 1
    %s400 = scalar_lea.sflag [#allocation5], 1
    %401 = vsyncpa %s400, 1

</llo_original>
